<compile_context>
chip_gen: v5e
topology: v5e:2x2
jax: 0.10.0
libtpu: 0.0.40
codegen_flags: <defaults>
</compile_context>

<pallas_src>
import functools

import jax
import jax.numpy as jnp
from jax.experimental import pallas as pl
from jax.experimental.pallas import tpu as pltpu

_NEG = -1e30  # "minus infinity" that stays finite under f32 arithmetic


def _fused_head_kernel(x_ref, w_ref, b_ref, out_ref, *, n_actions):
    """Fused policy+value head: one MXU matmul + masked log-softmax epilogue.

    x_ref   : (TB, D)        observation tile (streamed)
    w_ref   : (D, OUT_PAD)   fused weights: [:, :A] = W_pi, [:, A] = W_v, rest 0
    b_ref   : (1, OUT_PAD)   fused bias:    [:, :A] = b_pi, [:, A] = b_v,
                             padding columns = -1e30 (baked in)
    out_ref : (TB, OUT_PAD)  [:, :A] = log-probs, [:, A] = value, rest ~-1e30
    """
    slab = jnp.dot(x_ref[...], w_ref[...], preferred_element_type=jnp.float32)
    slab = slab + b_ref[...]  # f32 bias; padding columns already carry -1e30

    col = jax.lax.broadcasted_iota(jnp.int32, slab.shape, dimension=1)
    is_value = col == n_actions

    # Stable log-softmax over the logit columns.  Padding columns are already
    # ~-1e30 (bias-baked, weights zero) so only the value column must be
    # excluded from the reduction.
    masked = jnp.where(is_value, _NEG, slab)
    m = jnp.max(masked, axis=-1, keepdims=True)
    z = masked - m
    lse = jnp.log(jnp.sum(jnp.exp(z), axis=-1, keepdims=True))
    logp = z - lse

    # Lane-dense unmasked store: log-probs in logit columns, value in column A,
    # huge-negative in padding columns (exp -> 0, safe for downstream use).
    out_ref[...] = jnp.where(is_value, slab, logp).astype(out_ref.dtype)


def fuse_parametric_params(w_pi, b_pi, w_v, b_v, *, param_dtype=jnp.float32):
    """Build fused (D, OUT_PAD) weight and (1, OUT_PAD) bias ONCE.

    Call outside the per-step hot path and reuse; re-packing per forward call
    is pure HBM waste when the parameters are static.
    """
    D, A = w_pi.shape
    out_pad = ((A + 1 + 127) // 128) * 128
    w = jnp.zeros((D, out_pad), param_dtype)
    w = w.at[:, :A].set(w_pi.astype(param_dtype))
    w = w.at[:, A].set(w_v.reshape(D).astype(param_dtype))
    # Bias stays f32 (added to the f32 accumulator).  Padding columns baked to
    # -1e30 so the kernel epilogue does not need to mask them.
    b = jnp.full((1, out_pad), _NEG, jnp.float32)
    b = b.at[0, :A].set(b_pi.reshape(A).astype(jnp.float32))
    b = b.at[0, A].set(b_v.reshape(-1)[0].astype(jnp.float32))
    return w, b


def _batch_tiling(B, D, out_pad, itemsize):
    """Pick (tb, b_pad): >=~4 MiB HBM traffic per step, >=2 steps when possible."""
    bytes_per_row = itemsize * D + 4 * out_pad      # x read + f32 slab write
    tb_target = max(8, min(8192, (4 << 20) // bytes_per_row))
    tb_target -= tb_target % 8
    n_steps = pl.cdiv(B, tb_target)
    if B >= 16:
        n_steps = max(n_steps, 2)                   # both v7x TCs get work
    if n_steps <= 1:
        return B, B                                 # single full-batch block, no padding
    tb = ((pl.cdiv(B, n_steps) + 7) // 8) * 8       # f32 sublane multiple
    return tb, n_steps * tb


def _vmem_limit_bytes(need_bytes):
    """Generation-aware VMEM budget (v7x: 64 MiB/TC; v5e/v6e: 128 MiB)."""
    try:
        cap = int(getattr(pltpu.get_tpu_info(), "vmem_capacity_bytes", 0))
    except Exception:
        cap = 0
    if cap <= 0:
        cap = 64 << 20                              # conservative (v7x per-TC)
    return int(min(max(need_bytes, 32 << 20), 0.75 * cap))


@functools.partial(jax.jit, static_argnames=("n_actions",))
def parametric_forward_slab(x, w_fused, b_fused, *, n_actions):
    """Hot path: returns the padded (B_pad, OUT_PAD) output slab.

    Columns [:A] are Categorical log-probs, column A is the value estimate,
    columns > A hold ~-1e30 (exp -> 0), so the slab can be consumed directly
    (sampling / entropy / losses) without a compaction pass.
    """
    B, D = x.shape
    out_pad = w_fused.shape[1]
    itemsize = jnp.dtype(w_fused.dtype).itemsize

    # Optional bf16 input stream (param_dtype=bf16): cast in the wrapper, keep
    # f32 accumulate + f32 epilogue inside the kernel.
    x = x.astype(w_fused.dtype)

    tb, b_pad = _batch_tiling(B, D, out_pad, itemsize)
    if b_pad != B:
        x = jnp.pad(x, ((0, b_pad - B), (0, 0)))

    # TODO(synk): for very large D (2*D*out_pad*itemsize beyond ~half the
    # per-generation VMEM budget, e.g. huge fused heads on v7x's 64 MiB), add
    # a K-tiled grid axis ('arbitrary') with an f32 VMEM accumulator instead
    # of keeping the whole (D, OUT_PAD) weight resident.
    need = (2 * tb * (D * itemsize + out_pad * 4)   # x + out tiles, double-buffered
            + 2 * D * out_pad * itemsize            # fused weight buffers
            + 2 * out_pad * 4 + (2 << 20))          # bias + headroom

    kernel = functools.partial(_fused_head_kernel, n_actions=n_actions)
    out = pl.pallas_call(
        kernel,
        out_shape=jax.ShapeDtypeStruct((b_pad, out_pad), jnp.float32),
        grid=(b_pad // tb,),
        in_specs=[
            pl.BlockSpec((tb, D), lambda i: (i, 0)),        # streamed x tile
            pl.BlockSpec((D, out_pad), lambda i: (0, 0)),   # grid-invariant W
            pl.BlockSpec((1, out_pad), lambda i: (0, 0)),   # grid-invariant bias
        ],
        out_specs=pl.BlockSpec((tb, out_pad), lambda i: (i, 0)),
        compiler_params=pltpu.CompilerParams(
            dimension_semantics=("parallel",),              # megacore on v7x
            vmem_limit_bytes=_vmem_limit_bytes(need),
        ),
        cost_estimate=pl.CostEstimate(
            flops=2 * b_pad * D * out_pad,
            transcendentals=b_pad * out_pad,
            bytes_accessed=(b_pad * D * itemsize + D * out_pad * itemsize
                            + out_pad * 4 + b_pad * out_pad * 4),
        ),
    )(x, w_fused, b_fused)
    return out


class ParametricHead:
    """Concrete `Parametric`: flat observation -> (Categorical log-probs, value)."""

    def __init__(self, w_pi, b_pi, w_v, b_v, *, param_dtype=jnp.float32):
        self.n_actions = int(w_pi.shape[1])
        # Fused parameters built ONCE (hoisted out of the per-call hot path).
        self.w_fused, self.b_fused = fuse_parametric_params(
            w_pi, b_pi, w_v, b_v, param_dtype=param_dtype)

    def forward_slab(self, x):
        return parametric_forward_slab(
            x, self.w_fused, self.b_fused, n_actions=self.n_actions)

    def forward(self, x):
        # Convenience wrapper (NOT the hot path): compacts the padded slab to
        # (B, A) log-probs and (B, 1) value for inspection / testing.
        slab = self.forward_slab(x)
        B, A = x.shape[0], self.n_actions
        return slab[:B, :A], slab[:B, A:A + 1]


def _reference(x, w_pi, b_pi, w_v, b_v):
    logits = x @ w_pi + b_pi
    logp = logits - jax.scipy.special.logsumexp(logits, axis=-1, keepdims=True)
    value = x @ w_v + b_v
    return logp, value


if __name__ == "__main__":
    # Small shapes consistent with a Parametric over a flat Box observation
    # space (dim 32) and a singleton tuple of Discrete(6) action spaces.
    batch, obs_dim, n_actions = 2, 32, 6

    key = jax.random.PRNGKey(0)
    kx, kw1, kb1, kw2, kb2 = jax.random.split(key, 5)

    x = jax.random.normal(kx, (batch, obs_dim), dtype=jnp.float32)
    w_pi = 0.1 * jax.random.normal(kw1, (obs_dim, n_actions), dtype=jnp.float32)
    b_pi = 0.1 * jax.random.normal(kb1, (n_actions,), dtype=jnp.float32)
    w_v = 0.1 * jax.random.normal(kw2, (obs_dim, 1), dtype=jnp.float32)
    b_v = 0.1 * jax.random.normal(kb2, (1,), dtype=jnp.float32)

    head = ParametricHead(w_pi, b_pi, w_v, b_v)

    log_probs, value = head.forward(x)
    jax.block_until_ready((log_probs, value))

    ref_lp, ref_v = _reference(x, w_pi, b_pi.reshape(1, -1), w_v, b_v.reshape(1, 1))
    assert log_probs.shape == (batch, n_actions)
    assert value.shape == (batch, 1)
    assert jnp.allclose(log_probs, ref_lp, atol=1e-5), "log_probs mismatch"
    assert jnp.allclose(value, ref_v, atol=1e-5), "value mismatch"
    # log-probs of a Categorical must exponentiate-sum to 1
    assert jnp.allclose(jnp.exp(log_probs).sum(-1), 1.0, atol=1e-5)

    # The raw padded slab (hot-path output) is directly usable downstream:
    # exp() of everything except the value column must still sum to 1.
    slab = head.forward_slab(x)
    jax.block_until_ready(slab)
    probs = jnp.exp(slab[:batch]).at[:, n_actions].set(0.0).sum(-1)
    assert jnp.allclose(probs, 1.0, atol=1e-5), "padded slab not safe"

    print("KERNEL_OK")
</pallas_src>

<mosaic_0001>
module attributes {stable_mosaic.version = 11 : i64} {
  func.func @_fused_head_kernel(%arg0: i32, %arg1: memref<2x32xf32, #tpu.memory_space<vmem>>, %arg2: memref<32x128xf32, #tpu.memory_space<vmem>>, %arg3: memref<1x128xf32, #tpu.memory_space<vmem>>, %arg4: memref<2x128xf32, #tpu.memory_space<vmem>>) attributes {dimension_semantics = [#tpu.dimension_semantics<parallel>], iteration_bounds = array<i64: 1>, scalar_prefetch = 0 : i64, scratch_operands = 0 : i64, tpu.core_type = #tpu.core_type<tc>, window_params = [{transform_indices = @transform_0, window_bounds = array<i64: 2, 32>}, {pipeline_mode = #tpu.pipeline_mode<synchronous>, transform_indices = @transform_1, window_bounds = array<i64: 32, 128>}, {pipeline_mode = #tpu.pipeline_mode<synchronous>, transform_indices = @transform_2, window_bounds = array<i64: 1, 128>}, {transform_indices = @transform_3, window_bounds = array<i64: 2, 128>}]} {
    %c0 = arith.constant 0 : index
    %c0_0 = arith.constant 0 : index
    %0 = vector.load %arg1[%c0, %c0_0] : memref<2x32xf32, #tpu.memory_space<vmem>>, vector<2x32xf32>
    %c0_1 = arith.constant 0 : index
    %c0_2 = arith.constant 0 : index
    %1 = vector.load %arg2[%c0_1, %c0_2] : memref<32x128xf32, #tpu.memory_space<vmem>>, vector<32x128xf32>
    %cst = arith.constant dense<0.000000e+00> : vector<2x128xf32>
    %2 = tpu.matmul %0, %1, %cst {dimension_numbers = #tpu.dot_dimension_numbers<[1], [0], [0], [1], [0, 0, 1, 1], [], []>} : vector<2x32xf32>, vector<32x128xf32>, vector<2x128xf32> -> vector<2x128xf32>
    %c0_3 = arith.constant 0 : index
    %c0_4 = arith.constant 0 : index
    %3 = vector.load %arg3[%c0_3, %c0_4] : memref<1x128xf32, #tpu.memory_space<vmem>>, vector<1x128xf32>
    %4 = vector.broadcast %3 : vector<1x128xf32> to vector<2x128xf32>
    %5 = arith.addf %2, %4 : vector<2x128xf32>
    %6 = tpu.iota {dimensions = array<i32: 1>} : vector<2x128xi32>
    %c6_i32 = arith.constant 6 : i32
    %7 = vector.broadcast %c6_i32 : i32 to vector<2x128xi32>
    %8 = arith.cmpi eq, %6, %7 : vector<2x128xi32>
    %cst_5 = arith.constant -1.000000e+30 : f32
    %9 = vector.broadcast %cst_5 : f32 to vector<2x128xf32>
    %10 = arith.select %8, %9, %5 : vector<2x128xi1>, vector<2x128xf32>
    %cst_6 = arith.constant dense<0xFF800000> : vector<2xf32>
    %11 = vector.multi_reduction <maximumf>, %10, %cst_6 [1] : vector<2x128xf32> to vector<2xf32>
    %12 = vector.shape_cast %11 : vector<2xf32> to vector<2x1xf32>
    %13 = vector.broadcast %12 : vector<2x1xf32> to vector<2x128xf32>
    %14 = arith.subf %10, %13 : vector<2x128xf32>
    %15 = math.exp %14 : vector<2x128xf32>
    %cst_7 = arith.constant dense<0.000000e+00> : vector<2xf32>
    %16 = vector.multi_reduction <add>, %15, %cst_7 [1] : vector<2x128xf32> to vector<2xf32>
    %17 = vector.shape_cast %16 : vector<2xf32> to vector<2x1xf32>
    %18 = math.log %17 : vector<2x1xf32>
    %19 = vector.broadcast %18 : vector<2x1xf32> to vector<2x128xf32>
    %20 = arith.subf %14, %19 : vector<2x128xf32>
    %21 = arith.select %8, %5, %20 : vector<2x128xi1>, vector<2x128xf32>
    %c0_8 = arith.constant 0 : index
    %c0_9 = arith.constant 0 : index
    %22 = vector.load %arg4[%c0_8, %c0_9] : memref<2x128xf32, #tpu.memory_space<vmem>>, vector<2x128xf32>
    tpu.vector_store %arg4[%c0_8, %c0_9], %21 {strides = array<i32>} : memref<2x128xf32, #tpu.memory_space<vmem>>, vector<2x128xf32>,
    return
  }
  func.func @transform_0(%arg0: i32) -> (i32, i32) {
    %c0_i32 = arith.constant 0 : i32
    %c0_i32_0 = arith.constant 0 : i32
    return %arg0, %c0_i32 : i32, i32
  }
  func.func @transform_1(%arg0: i32) -> (i32, i32) {
    %c0_i32 = arith.constant 0 : i32
    %c0_i32_0 = arith.constant 0 : i32
    %c0_i32_1 = arith.constant 0 : i32
    return %c0_i32, %c0_i32_0 : i32, i32
  }
  func.func @transform_2(%arg0: i32) -> (i32, i32) {
    %c0_i32 = arith.constant 0 : i32
    %c0_i32_0 = arith.constant 0 : i32
    %c0_i32_1 = arith.constant 0 : i32
    return %c0_i32, %c0_i32_0 : i32, i32
  }
  func.func @transform_3(%arg0: i32) -> (i32, i32) {
    %c0_i32 = arith.constant 0 : i32
    %c0_i32_0 = arith.constant 0 : i32
    return %arg0, %c0_i32 : i32, i32
  }
}

</mosaic_0001>

<llo_original>
// kernel: parametric_forward_slab.1
$region0: #{parametric_forward_slab.1}
  #allocation0 [shape = 'u32[]', space=smem, size = 0x4, offset = 0x4, fixed_abs, tag = 'smem constant byte address 0x4 - core index']
  #allocation1 [shape = 'u32[72,128]{1,0:T(1,128)}', space=vmem, size = 0x9000, scoped, tag = 'internal scratch']
  %s0 = inlined_call_operand.hbm [shape: f32[2,32], index: 0, kind: input, shape index: {}]
  %s1 = inlined_call_operand.hbm [shape: f32[32,128], index: 1, kind: input, shape index: {}]
  %s2 = inlined_call_operand.vmem [shape: f32[1,128], index: 2, kind: input, shape index: {}]
  %s3 = inlined_call_operand.hbm [shape: f32[2,128], index: 3, kind: output, shape index: {}]
  %s4 = sld [smem:[#allocation0]]
  $region30: #{parametric_forward_slab.1} parent=0
    _
  %s6 = ssub.s32 1, %s4
  %s7 = scalar_select 0, %s6, %s4
  $region1: #{parametric_forward_slab.1} parent=0
    #allocation2 [shape = 'u8[1024]{0}', space=vmem, size = 0x400, scoped, tag = 'input window, operand 0, single buffered']
    #allocation3 [shape = 's32[1]{0}', space=sflag, size = 0x4, scoped, tag = 'scoped memory for parametric_forward_slab.1']
    #allocation4 [shape = 's32[1]{0}', space=sflag, size = 0x4, scoped, tag = 'scoped memory for parametric_forward_slab.1']
    #allocation5 [shape = 'u8[16384]{0}', space=vmem, size = 0x4000, scoped, tag = 'input window, operand 1, single buffered']
    #allocation6 [shape = 's32[1]{0}', space=sflag, size = 0x4, scoped, tag = 'scoped memory for parametric_forward_slab.1']
    #allocation7 [shape = 'u8[1024]{0}', space=vmem, size = 0x400, scoped, tag = 'output window, operand 0, single buffered']
    %8 = vsyncpa [#allocation3], 0
    %9 = vsyncpa [#allocation6], 0
    %10 = vsyncpa [#allocation4], 0
    // Predicated region
    $region2: #{parametric_forward_slab.1} parent=1 // pred_check
      _
    $region3: #{parametric_forward_slab.1} parent=1 // pred_check_branch
      %12 = sbr.rel (0) target = $region5
    $region4: #{parametric_forward_slab.1} parent=1 // pred_region
      %14 = vsyncadd [#allocation3], 0
      %s16 = sshll.u32 %s0, 4
      %s17 = int_to_ptr.hbm [resolvable:$true] %s16
      %s18 = sshll.u32 [#allocation2], 4
      %s19 = int_to_ptr.vmem [resolvable:$true] %s18
      %21 = dma.hbm_to_vmem [thread:$0]  %s17, 32, %s19, [#allocation3]
    $region5: #{parametric_forward_slab.1} parent=1 // pred_fallthru
      _
    // Predicated region
    $region6: #{parametric_forward_slab.1} parent=1 // pred_check
      _
    $region7: #{parametric_forward_slab.1} parent=1 // pred_check_branch
      %23 = sbr.rel (0) target = $region9
    $region8: #{parametric_forward_slab.1} parent=1 // pred_region
      %25 = vsyncadd [#allocation6], 0
      %s26 = sshll.u32 %s1, 4
      %s27 = int_to_ptr.hbm [resolvable:$true] %s26
      %s28 = sshll.u32 [#allocation5], 4
      %s29 = int_to_ptr.vmem [resolvable:$true] %s28
      %34 = dma.hbm_to_vmem [thread:$0]  %s27, 512, %s29, [#allocation6], 128, 128, 8
    $region9: #{parametric_forward_slab.1} parent=1 // pred_fallthru
      _
    // Predicated region
    $region10: #{parametric_forward_slab.1} parent=1 // pred_check
      _
    $region11: #{parametric_forward_slab.1} parent=1 // pred_check_branch
      %36 = sbr.rel (0) target = $region13
    $region12: #{parametric_forward_slab.1} parent=1 // pred_region
      _
    $region13: #{parametric_forward_slab.1} parent=1 // pred_fallthru
      _
    // Predicated region
    $region14: #{parametric_forward_slab.1} parent=1 // pred_check
      _
    $region15: #{parametric_forward_slab.1} parent=1 // pred_check_branch
      %38 = sbr.rel (0) target = $region17
    $region16: #{parametric_forward_slab.1} parent=1 // pred_region
      %40 = dma.done [#allocation3], 32
    $region17: #{parametric_forward_slab.1} parent=1 // pred_fallthru
      _
    // Predicated region
    $region18: #{parametric_forward_slab.1} parent=1 // pred_check
      _
    $region19: #{parametric_forward_slab.1} parent=1 // pred_check_branch
      %42 = sbr.rel (0) target = $region21
    $region20: #{parametric_forward_slab.1} parent=1 // pred_region
      %44 = dma.done [#allocation6], 512
    $region21: #{parametric_forward_slab.1} parent=1 // pred_fallthru
      _
    %v45 = vld [vmem:[#allocation2] sm:$0x3]
    %v46 = vld [vmem:[#allocation5] sm:$0xff]
    %v47 = vld [vmem:[#allocation5 + $0x8] sm:$0xff]
    %v48 = vld [vmem:[#allocation5 + $0x10] sm:$0xff]
    %v49 = vld [vmem:[#allocation5 + $0x18] sm:$0xff]
    %v50 = vld [vmem:[%s2] sm:$0x1]
    %v52 = vperm.slane %v50, 0
    %vm54 = vcmask 261120
    %v56 = vsel %vm54, %v45, 0
    %58 = vmatpush.msra.mxu0 0.0
    %59 = vmatpush.msra.mxu0 0.0
    %60 = vmatpush.msra.mxu0 0.0
    %61 = vmatpush.msra.mxu0 0.0
    %62 = vmatpush.msra.mxu0 0.0
    %63 = vmatpush.msra.mxu0 0.0
    %64 = vmatpush.msra.mxu0 0.0
    %65 = vmatpush.msra.mxu0 0.0
    %66 = vmatpush.msra.mxu0 0.0
    %67 = vmatpush.msra.mxu0 0.0
    %68 = vmatpush.msra.mxu0 0.0
    %69 = vmatpush.msra.mxu0 0.0
    %70 = vmatpush.msra.mxu0 %v49
    %71 = vmatpush.msra.mxu0 %v48
    %72 = vmatpush.msra.mxu0 %v47
    %73 = vmatpush.msra.mxu0 %v46
    %74 = vmatmul.f32.gmra.mxu0 %v56
    %v75 = vpop.f32.mrf.mxu0
    %v76 = vadd.f32 %v52, %v75
    %77 = vdwg.mxu0
    %v78 = vlaneseq
    %v79 = vand.u32 %v78, 127
    %vm80 = vcmp.eq.s32.totalorder %v79, 6
    %v81 = vsel %vm80, -1e+30, %v76
    %vm82 = vcmask 1041408
    %v83 = vsel %vm82, %v81, -inf
    %84 = vmax.xlane.f32.xlu0 %v83
    %v85 = vpop.xlane.xlu0 %84
    %v86 = vsub.f32 %v81, %v85
    %v87 = vmul.f32 %v86, 1.442695
    %v88 = vpow.pop %v87
    %v89 = vsel %vm82, %v88, 0.0
    %90 = vadd.xlane.f32.xlu0 %v89
    %v91 = vpop.xlane.xlu0 %90
    %v92 = vlog2.pop %v91
    %v93 = vmul.f32 %v92, 0.6931472
    %v94 = vsub.f32 %v86, %v93
    %v95 = vsel %vm80, %v76, %v94
    %96 = vst [vmem:[#allocation7] sm:$0x3] %v95
    // Predicated region
    $region22: #{parametric_forward_slab.1} parent=1 // pred_check
      _
    $region23: #{parametric_forward_slab.1} parent=1 // pred_check_branch
      %98 = sbr.rel (0) target = $region25
    $region24: #{parametric_forward_slab.1} parent=1 // pred_region
      %100 = vsyncadd [#allocation4], 0
      %s102 = sshll.u32 [#allocation7], 4
      %s103 = int_to_ptr.vmem [resolvable:$true] %s102
      %s104 = sshll.u32 %s3, 4
      %s105 = int_to_ptr.hbm [resolvable:$true] %s104
      %107 = dma.vmem_to_hbm [thread:$0]  %s103, 32, %s105, [#allocation4]
    $region25: #{parametric_forward_slab.1} parent=1 // pred_fallthru
      _
    // Predicated region
    $region26: #{parametric_forward_slab.1} parent=1 // pred_check
      _
    $region27: #{parametric_forward_slab.1} parent=1 // pred_check_branch
      %109 = sbr.rel (0) target = $region29
    $region28: #{parametric_forward_slab.1} parent=1 // pred_region
      %111 = dma.done [#allocation4], 32
    $region29: #{parametric_forward_slab.1} parent=1 // pred_fallthru
      _
    %112 = vsyncpa [#allocation3], 1
    %113 = vsyncpa [#allocation6], 1
    %114 = vsyncpa [#allocation4], 1

</llo_original>
